<compile_context>
chip_gen: v5e
topology: v5e:2x2
jax: 0.10.0
libtpu: 0.0.40
codegen_flags: <defaults>
</compile_context>

<pallas_src>
import math

import jax
import jax.numpy as jnp
from jax.experimental import pallas as pl
from jax.experimental.pallas import tpu as pltpu

_LANE = 128
_SUBLANE = 8


def _cdiv(a, b):
    return -(-a // b)


def _round_up(a, m):
    return _cdiv(a, m) * m


def _num_tensorcores():
    """Best-effort TensorCores-per-device count (>=2 only on megacore/v7x-style chips)."""
    try:
        return max(1, int(getattr(jax.devices()[0], "num_cores", 1) or 1))
    except Exception:
        return 1


def _make_gmm_nll_kernel(*, ncenter, ndim, n_rows, tile, steps,
                         neg_log_sigma_min, n_full_blocks, mask_rows):
    D = ncenter * ndim

    def kernel(pred_ref, tgt_ref, res_ref):
        c = pl.program_id(0)   # chunk axis (core-parallel / parallel)
        s = pl.program_id(1)   # step axis (reduction, "arbitrary")

        # Output block (8, D) is resident across the step axis -> accumulator.
        @pl.when(s == 0)
        def _init():
            res_ref[...] = jnp.zeros_like(res_ref)

        # Static channel slices taken on the Ref: the unused first `ncenter`
        # mixture-weight columns are never cast or touched.
        mus = pred_ref[:, ncenter:ncenter + D].astype(jnp.float32)          # (tile, D)
        nls = jnp.minimum(
            pred_ref[:, ncenter + D:ncenter + 2 * D].astype(jnp.float32),
            jnp.float32(neg_log_sigma_min))                                  # (tile, D)
        inv_sigma = jnp.exp(nls)                                             # EUP slot

        # Broadcast target over centers in VMEM (no HBM tiling of the target).
        tgt = tgt_ref[...].astype(jnp.float32)                               # (tile, ndim)
        tgt_rep = (jnp.concatenate([tgt] * ncenter, axis=1)
                   if ncenter > 1 else tgt)                                  # (tile, D)

        z = (tgt_rep - mus) * inv_sigma
        # Per-element contribution with A = 0.5*ln(2*pi) hoisted to the epilogue.
        val = 0.5 * (z * z) - nls

        def _fold(v):
            # Fold sublane groups into one (8, D) slab: pure vreg adds (VPU).
            return v.reshape(tile // _SUBLANE, _SUBLANE, D).sum(axis=0)

        if mask_rows:
            block_idx = c * steps + s
            is_tail = block_idx >= n_full_blocks

            @pl.when(jnp.logical_not(is_tail))
            def _interior():
                res_ref[...] += _fold(val)

            @pl.when(is_tail)
            def _tail():
                rows = block_idx * tile + jax.lax.broadcasted_iota(
                    jnp.int32, (tile, D), 0)
                # Keep this a select (vsel): padded/clamped rows may hold
                # NaN/Inf garbage and a mask-multiply would propagate it.
                res_ref[...] += _fold(jnp.where(rows < n_rows, val, 0.0))
        else:
            res_ref[...] += _fold(val)

    return kernel


def gmm_log_loss(output, target, ncenter, ndim, sigma_min=0.03,
                 max_tile_rows=32768, n_chunks=2,
                 input_tile_bytes=4 << 20, core_parallel=None):
    """Pallas implementation of GMMLogLoss.forward.

    output: [b, T, ncenter + 2*ncenter*ndim]
    target: [b, T, ndim]
    returns scalar f32 mean negative log-likelihood.
    """
    b, T, C_total = output.shape
    D = ncenter * ndim
    assert C_total == ncenter + 2 * D, "channel count mismatch"
    assert target.shape == (b, T, ndim), "target shape mismatch"
    N = b * T

    # Free reshapes only — no channel slicing / center tiling in HBM.
    pred2d = output.reshape(N, C_total)
    tgt2d = target.reshape(N, ndim)

    # --- tile planning with padded-lane VMEM accounting ----------------------
    pred_row_b = _round_up(C_total, _LANE) * jnp.dtype(output.dtype).itemsize
    tgt_row_b = _round_up(ndim, _LANE) * jnp.dtype(target.dtype).itemsize

    tile_cap = max(_SUBLANE, min(input_tile_bytes // pred_row_b,
                                 input_tile_bytes // tgt_row_b))
    tile = min(max_tile_rows, tile_cap, _round_up(N, _SUBLANE))
    tile = max(_SUBLANE, (tile // _SUBLANE) * _SUBLANE)     # sublane-aligned

    n_row_blocks = _cdiv(N, tile)

    if core_parallel is None:
        core_parallel = _num_tensorcores() >= 2 and hasattr(pltpu, "CORE_PARALLEL")
    if core_parallel:
        n_chunks = max(n_chunks, 2)
        n_chunks += n_chunks % 2          # multiple of the 2 TensorCores
    n_chunks = max(1, min(n_chunks, n_row_blocks))
    steps = _cdiv(n_row_blocks, n_chunks)
    last_block = n_row_blocks - 1
    exact_cover = (n_chunks * steps * tile == N)

    def in_idx(c, s):
        # Clamp so no DMA window starts fully past the array; clamped blocks
        # contribute zero via the tail mask.
        return (jnp.minimum(c * steps + s, last_block), 0)

    kernel = _make_gmm_nll_kernel(
        ncenter=ncenter, ndim=ndim, n_rows=N, tile=tile, steps=steps,
        neg_log_sigma_min=math.log(1.0 / sigma_min),
        n_full_blocks=N // tile, mask_rows=not exact_cover)

    # Double-buffered padded input tiles + double-buffered tiny output block.
    vmem_need = 2 * tile * (pred_row_b + tgt_row_b) \
        + 2 * _SUBLANE * _round_up(D, _LANE) * 4
    vmem_limit = int(max(vmem_need + (4 << 20), 32 << 20))

    if core_parallel:
        dim_sem = (pltpu.CORE_PARALLEL, pltpu.ARBITRARY)
    else:
        dim_sem = ("parallel", "arbitrary")

    partial = pl.pallas_call(
        kernel,
        out_shape=jax.ShapeDtypeStruct((n_chunks * _SUBLANE, D), jnp.float32),
        grid_spec=pltpu.PrefetchScalarGridSpec(
            num_scalar_prefetch=0,
            grid=(n_chunks, steps),
            in_specs=[pl.BlockSpec((tile, C_total), in_idx),
                      pl.BlockSpec((tile, ndim), in_idx)],
            out_specs=pl.BlockSpec((_SUBLANE, D), lambda c, s: (c, 0)),
        ),
        compiler_params=pltpu.CompilerParams(
            dimension_semantics=dim_sem,
            vmem_limit_bytes=vmem_limit),
    )(pred2d, tgt2d)

    # Tiny final reduce + hoisted constant + mean in plain JAX.
    a_const = 0.5 * math.log(2.0 * math.pi)
    return (jnp.float32(a_const)
            + jnp.sum(partial) / jnp.float32(N * D)).astype(jnp.float32)


def gmm_log_loss_ref(output, target, ncenter, ndim, sigma_min=0.03):
    """Pure-JAX reference matching the PyTorch module."""
    b, T, _ = target.shape
    out_f = output.astype(jnp.float32)
    tgt_f = target.astype(jnp.float32)
    D = ncenter * ndim
    mus = out_f[:, :, ncenter:ncenter + D].reshape(b, T, ncenter, ndim)
    nls_pred = out_f[:, :, ncenter + D:].reshape(b, T, ncenter, ndim)
    nls_min = jnp.log(jnp.ones_like(nls_pred) * (1.0 / sigma_min))
    nls = jnp.minimum(nls_pred, nls_min)
    inv_sigmas = jnp.exp(nls)
    target_rep = jnp.broadcast_to(tgt_f[:, :, None, :], (b, T, ncenter, ndim))
    mu_diff = target_rep - mus
    A = 0.5 * math.log(2 * math.pi)
    nll = A - nls + 0.5 * (mu_diff * inv_sigmas) ** 2
    return nll.mean()


if __name__ == "__main__":
    # Small shapes consistent with the module's forward.
    b, T = 2, 16
    ncenter, ndim = 4, 8
    out_ch = ncenter + 2 * ncenter * ndim  # 4 + 64 = 68

    key = jax.random.PRNGKey(0)
    k1, k2, k3, k4 = jax.random.split(key, 4)
    output = jax.random.normal(k1, (b, T, out_ch), dtype=jnp.float32)
    target = jax.random.normal(k2, (b, T, ndim), dtype=jnp.float32)

    loss_fn = jax.jit(
        lambda o, t: gmm_log_loss(o, t, ncenter=ncenter, ndim=ndim))
    loss = jax.block_until_ready(loss_fn(output, target))
    ref = gmm_log_loss_ref(output, target, ncenter=ncenter, ndim=ndim)
    assert jnp.allclose(loss, ref, rtol=1e-5, atol=1e-5), (loss, ref)

    # Ragged case (N not a multiple of the sublane-aligned tile) exercises the
    # tail-only masking path.
    T2 = 13
    output2 = jax.random.normal(k3, (b, T2, out_ch), dtype=jnp.float32)
    target2 = jax.random.normal(k4, (b, T2, ndim), dtype=jnp.float32)
    loss2 = jax.block_until_ready(
        jax.jit(lambda o, t: gmm_log_loss(o, t, ncenter=ncenter, ndim=ndim))(
            output2, target2))
    ref2 = gmm_log_loss_ref(output2, target2, ncenter=ncenter, ndim=ndim)
    assert jnp.allclose(loss2, ref2, rtol=1e-5, atol=1e-5), (loss2, ref2)

    print("KERNEL_OK")
</pallas_src>

<mosaic_0001>
module attributes {stable_mosaic.version = 11 : i64} {
  func.func @kernel(%arg0: i32, %arg1: i32, %arg2: memref<32x68xf32, #tpu.memory_space<vmem>>, %arg3: memref<32x8xf32, #tpu.memory_space<vmem>>, %arg4: memref<8x32xf32, #tpu.memory_space<vmem>>) attributes {dimension_semantics = [#tpu.dimension_semantics<parallel>, #tpu.dimension_semantics<arbitrary>], iteration_bounds = array<i64: 1, 1>, scalar_prefetch = 0 : i64, scratch_operands = 0 : i64, tpu.core_type = #tpu.core_type<tc>, window_params = [{transform_indices = @transform_0, window_bounds = array<i64: 32, 68>}, {transform_indices = @transform_1, window_bounds = array<i64: 32, 8>}, {transform_indices = @transform_2, window_bounds = array<i64: 8, 32>}]} {
    %c0_i32 = arith.constant 0 : i32
    %0 = arith.cmpi eq, %arg1, %c0_i32 : i32
    %1 = arith.extui %0 : i1 to i32
    %c0_i32_0 = arith.constant 0 : i32
    %2 = arith.cmpi ne, %1, %c0_i32_0 : i32
    scf.if %2 {
      %cst_10 = arith.constant 0.000000e+00 : f32
      %21 = vector.broadcast %cst_10 : f32 to vector<8x32xf32>
      %c0_11 = arith.constant 0 : index
      %c0_12 = arith.constant 0 : index
      %22 = vector.load %arg4[%c0_11, %c0_12] : memref<8x32xf32, #tpu.memory_space<vmem>>, vector<8x32xf32>
      tpu.vector_store %arg4[%c0_11, %c0_12], %21 {strides = array<i32>} : memref<8x32xf32, #tpu.memory_space<vmem>>, vector<8x32xf32>,
    } else {
    }
    %c0 = arith.constant 0 : index
    %c4 = arith.constant 4 : index
    %3 = vector.load %arg2[%c0, %c4] : memref<32x68xf32, #tpu.memory_space<vmem>>, vector<32x32xf32>
    %c0_1 = arith.constant 0 : index
    %c36 = arith.constant 36 : index
    %4 = vector.load %arg2[%c0_1, %c36] : memref<32x68xf32, #tpu.memory_space<vmem>>, vector<32x32xf32>
    %cst = arith.constant 3.50655794 : f32
    %5 = vector.broadcast %cst : f32 to vector<32x32xf32>
    %6 = arith.minimumf %4, %5 : vector<32x32xf32>
    %7 = math.exp %6 : vector<32x32xf32>
    %c0_2 = arith.constant 0 : index
    %c0_3 = arith.constant 0 : index
    %8 = vector.load %arg3[%c0_2, %c0_3] : memref<32x8xf32, #tpu.memory_space<vmem>>, vector<32x8xf32>
    %9 = tpu.concatenate %8, %8, %8, %8 in 1 : vector<32x8xf32>, vector<32x8xf32>, vector<32x8xf32>, vector<32x8xf32> -> vector<32x32xf32>
    %10 = arith.subf %9, %3 : vector<32x32xf32>
    %11 = arith.mulf %10, %7 : vector<32x32xf32>
    %12 = arith.mulf %11, %11 : vector<32x32xf32>
    %cst_4 = arith.constant 5.000000e-01 : f32
    %13 = vector.broadcast %cst_4 : f32 to vector<32x32xf32>
    %14 = arith.mulf %13, %12 : vector<32x32xf32>
    %15 = arith.subf %14, %6 : vector<32x32xf32>
    %c0_5 = arith.constant 0 : index
    %c0_6 = arith.constant 0 : index
    %16 = vector.load %arg4[%c0_5, %c0_6] : memref<8x32xf32, #tpu.memory_space<vmem>>, vector<8x32xf32>
    %17 = vector.shape_cast %15 : vector<32x32xf32> to vector<4x8x32xf32>
    %cst_7 = arith.constant dense<0.000000e+00> : vector<8x32xf32>
    %18 = vector.multi_reduction <add>, %17, %cst_7 [0] : vector<4x8x32xf32> to vector<8x32xf32>
    %19 = arith.addf %16, %18 : vector<8x32xf32>
    %c0_8 = arith.constant 0 : index
    %c0_9 = arith.constant 0 : index
    %20 = vector.load %arg4[%c0_8, %c0_9] : memref<8x32xf32, #tpu.memory_space<vmem>>, vector<8x32xf32>
    tpu.vector_store %arg4[%c0_8, %c0_9], %19 {strides = array<i32>} : memref<8x32xf32, #tpu.memory_space<vmem>>, vector<8x32xf32>,
    return
  }
  func.func @transform_0(%arg0: i32, %arg1: i32) -> (i32, i32) {
    %c1_i32 = arith.constant 1 : i32
    %0 = arith.muli %arg0, %c1_i32 : i32
    %1 = arith.addi %0, %arg1 : i32
    %c0_i32 = arith.constant 0 : i32
    %2 = arith.minsi %1, %c0_i32 : i32
    %c0_i32_0 = arith.constant 0 : i32
    %c0_i32_1 = arith.constant 0 : i32
    return %2, %c0_i32_0 : i32, i32
  }
  func.func @transform_1(%arg0: i32, %arg1: i32) -> (i32, i32) {
    %c1_i32 = arith.constant 1 : i32
    %0 = arith.muli %arg0, %c1_i32 : i32
    %1 = arith.addi %0, %arg1 : i32
    %c0_i32 = arith.constant 0 : i32
    %2 = arith.minsi %1, %c0_i32 : i32
    %c0_i32_0 = arith.constant 0 : i32
    %c0_i32_1 = arith.constant 0 : i32
    return %2, %c0_i32_0 : i32, i32
  }
  func.func @transform_2(%arg0: i32, %arg1: i32) -> (i32, i32) {
    %c0_i32 = arith.constant 0 : i32
    %c0_i32_0 = arith.constant 0 : i32
    return %arg0, %c0_i32 : i32, i32
  }
}

</mosaic_0001>

<llo_original>
// kernel: _lambda_.1
$region0: #{_lambda_.1}
  #allocation0 [shape = 'u32[]', space=smem, size = 0x4, offset = 0x4, fixed_abs, tag = 'smem constant byte address 0x4 - core index']
  #allocation1 [shape = 'u32[72,128]{1,0:T(1,128)}', space=vmem, size = 0x9000, scoped, tag = 'internal scratch']
  %s0 = inlined_call_operand.vmem [shape: f32[32,68], index: 0, kind: input, shape index: {}]
  %s1 = inlined_call_operand.vmem [shape: f32[32,8], index: 1, kind: input, shape index: {}]
  %s2 = inlined_call_operand.vmem [shape: f32[8,32], index: 2, kind: output, shape index: {}]
  %s3 = sld [smem:[#allocation0]]
  $region22: #{_lambda_.1} parent=0
    _
  %s5 = ssub.s32 1, %s3
  %s6 = scalar_select 0, %s5, %s3
  // Predicated region
  $region2: #{_lambda_.1} parent=0 // pred_check
    _
  $region3: #{_lambda_.1} parent=0 // pred_check_branch
    %8 = sbr.rel (0) target = $region5
  $region4: #{_lambda_.1} parent=0 // pred_region
    %s9 = sadd.s32 0, 0
    %p10 = scmp.lt.s32.totalorder %s9, 0
    %s11 = scalar_select %p10, %s9, 0
    %s12 = smul.u32 4, %s11
    %p13 = scmp.lt.s32.totalorder %s12, 3
    %s14 = scalar_select %p13, %s12, 3
    %s15 = smul.addr %s14, 8
    %s16 = scalar_lea.vmem %s0, %s15
    %s17 = sadd.s32 0, 0
    %p18 = scmp.lt.s32.totalorder %s17, 0
    %s19 = scalar_select %p18, %s17, 0
    %s20 = smul.u32 4, %s19
  $region5: #{_lambda_.1} parent=0 // pred_fallthru
    _
  // Predicated region
  $region6: #{_lambda_.1} parent=0 // pred_check
    _
  $region7: #{_lambda_.1} parent=0 // pred_check_branch
    %22 = sbr.rel (0) target = $region9
  $region8: #{_lambda_.1} parent=0 // pred_region
    %s23 = sadd.s32 0, 0
    %p24 = scmp.lt.s32.totalorder %s23, 0
    %s25 = scalar_select %p24, %s23, 0
    %s26 = smul.u32 4, %s25
    %p27 = scmp.lt.s32.totalorder %s26, 3
    %s28 = scalar_select %p27, %s26, 3
    %s29 = smul.addr %s28, 8
    %s30 = scalar_lea.vmem %s1, %s29
    %s31 = sadd.s32 0, 0
    %p32 = scmp.lt.s32.totalorder %s31, 0
    %s33 = scalar_select %p32, %s31, 0
    %s34 = smul.u32 4, %s33
  $region9: #{_lambda_.1} parent=0 // pred_fallthru
    _
  %s35 = sadd.s32 0, 0
  %p36 = scmp.lt.s32.totalorder %s35, 0
  %s37 = scalar_select %p36, %s35, 0
  %s38 = smul.u32 4, %s37
  %p39 = scmp.lt.s32.totalorder %s38, 3
  %s40 = scalar_select %p39, %s38, 3
  %s41 = smul.addr %s40, 8
  %s42 = scalar_lea.vmem %s0, %s41
  %s43 = sadd.s32 0, 0
  %p44 = scmp.lt.s32.totalorder %s43, 0
  %s45 = scalar_select %p44, %s43, 0
  %s46 = smul.u32 4, %s45
  %p47 = scmp.lt.s32.totalorder %s46, 3
  %s48 = scalar_select %p47, %s46, 3
  %s49 = smul.addr %s48, 8
  %s50 = scalar_lea.vmem %s1, %s49
  %s51 = sadd.s32 0, 0
  %p52 = scmp.lt.s32.totalorder %s51, 0
  %s53 = scalar_select %p52, %s51, 0
  %s54 = smul.u32 4, %s53
  %p55 = scmp.lt.s32.totalorder %s54, 3
  %s56 = scalar_select %p55, %s54, 3
  %s57 = smul.addr %s56, 8
  %s58 = scalar_lea.vmem %s0, %s57
  %s59 = sadd.s32 0, 0
  %p60 = scmp.lt.s32.totalorder %s59, 0
  %s61 = scalar_select %p60, %s59, 0
  %s62 = smul.u32 4, %s61
  %s63 = sadd.s32 0, 0
  %p64 = scmp.lt.s32.totalorder %s63, 0
  %s65 = scalar_select %p64, %s63, 0
  %s66 = smul.u32 4, %s65
  %p67 = scmp.lt.s32.totalorder %s66, 3
  %s68 = scalar_select %p67, %s66, 3
  %s69 = smul.addr %s68, 8
  %s70 = scalar_lea.vmem %s1, %s69
  %s71 = sadd.s32 0, 0
  %p72 = scmp.lt.s32.totalorder %s71, 0
  %s73 = scalar_select %p72, %s71, 0
  %s74 = smul.u32 4, %s73
  %p75 = scmp.eq.s32.totalorder 0, 0
  // Predicated region
  $region10: #{_lambda_.1} parent=0 // pred_check
    %p76 = pneg %p75
  $region11: #{_lambda_.1} parent=0 // pred_check_branch
    %78 = sbr.rel (%p76) target = $region13
  $region12: #{_lambda_.1} parent=0 // pred_region
    %vm79 = vcmask 261120
    %80 = vst.msk [vmem:[%s2] sm:$0xff] %vm79, 0.0
  $region13: #{_lambda_.1} parent=0 // pred_fallthru
    _
  %v81 = vld [vmem:[%s58] sm:$0xff]
  %v82 = vld [vmem:[%s58 + $0x8] sm:$0xff]
  %v83 = vld [vmem:[%s58 + $0x10] sm:$0xff]
  %v84 = vld [vmem:[%s58 + $0x18] sm:$0xff]
  %v85 = vmin.f32 %v81, 3.506558
  %v86 = vmin.f32 %v82, 3.506558
  %v87 = vmin.f32 %v83, 3.506558
  %v88 = vmin.f32 %v84, 3.506558
  %v89 = vmul.f32 %v85, 1.442695
  %v90 = vpow.pop %v89
  %v91 = vmul.f32 %v86, 1.442695
  %v92 = vpow.pop %v91
  %v93 = vmul.f32 %v87, 1.442695
  %v94 = vpow.pop %v93
  %v95 = vmul.f32 %v88, 1.442695
  %v96 = vpow.pop %v95
  %v97 = vld [vmem:[%s70] sm:$0xff]
  %v98 = vld [vmem:[%s70 + $0x8] sm:$0xff]
  %v99 = vld [vmem:[%s70 + $0x10] sm:$0xff]
  %v100 = vld [vmem:[%s70 + $0x18] sm:$0xff]
  %105 = vrot.lane.b32.xlu0 %v97, 8
  %v106 = vpop.permute.xlu0 %105
  %107 = vrot.lane.b32.xlu0 %v98, 8
  %v108 = vpop.permute.xlu0 %107
  %109 = vrot.lane.b32.xlu0 %v99, 8
  %v110 = vpop.permute.xlu0 %109
  %111 = vrot.lane.b32.xlu0 %v100, 8
  %v112 = vpop.permute.xlu0 %111
  %117 = vrot.lane.b32.xlu0 %v97, 16
  %v118 = vpop.permute.xlu0 %117
  %119 = vrot.lane.b32.xlu0 %v98, 16
  %v120 = vpop.permute.xlu0 %119
  %121 = vrot.lane.b32.xlu0 %v99, 16
  %v122 = vpop.permute.xlu0 %121
  %123 = vrot.lane.b32.xlu0 %v100, 16
  %v124 = vpop.permute.xlu0 %123
  %129 = vrot.lane.b32.xlu0 %v97, 24
  %v130 = vpop.permute.xlu0 %129
  %131 = vrot.lane.b32.xlu0 %v98, 24
  %v132 = vpop.permute.xlu0 %131
  %133 = vrot.lane.b32.xlu0 %v99, 24
  %v134 = vpop.permute.xlu0 %133
  %135 = vrot.lane.b32.xlu0 %v100, 24
  %v136 = vpop.permute.xlu0 %135
  %vm141 = vcmask 64512
  %v142 = vsel %vm141, %v97, %v106
  %v143 = vsel %vm141, %v98, %v108
  %v144 = vsel %vm141, %v99, %v110
  %v145 = vsel %vm141, %v100, %v112
  %vm146 = vcmask 130048
  %v147 = vsel %vm146, %v142, %v118
  %v148 = vsel %vm146, %v143, %v120
  %v149 = vsel %vm146, %v144, %v122
  %v150 = vsel %vm146, %v145, %v124
  %vm151 = vcmask 195584
  %v152 = vsel %vm151, %v147, %v130
  %v153 = vsel %vm151, %v148, %v132
  %v154 = vsel %vm151, %v149, %v134
  %v155 = vsel %vm151, %v150, %v136
  %160 = vrot.lane.b32.xlu0 %v81, 124
  %v161 = vpop.permute.xlu0 %160
  %162 = vrot.lane.b32.xlu0 %v82, 124
  %v163 = vpop.permute.xlu0 %162
  %164 = vrot.lane.b32.xlu0 %v83, 124
  %v165 = vpop.permute.xlu0 %164
  %166 = vrot.lane.b32.xlu0 %v84, 124
  %v167 = vpop.permute.xlu0 %166
  %v172 = vsub.f32 %v152, %v161
  %v173 = vsub.f32 %v153, %v163
  %v174 = vsub.f32 %v154, %v165
  %v175 = vsub.f32 %v155, %v167
  %180 = vrot.lane.b32.xlu0 %v90, 92
  %v181 = vpop.permute.xlu0 %180
  %182 = vrot.lane.b32.xlu0 %v92, 92
  %v183 = vpop.permute.xlu0 %182
  %184 = vrot.lane.b32.xlu0 %v94, 92
  %v185 = vpop.permute.xlu0 %184
  %186 = vrot.lane.b32.xlu0 %v96, 92
  %v187 = vpop.permute.xlu0 %186
  %v192 = vmul.f32 %v172, %v181
  %v193 = vmul.f32 %v173, %v183
  %v194 = vmul.f32 %v174, %v185
  %v195 = vmul.f32 %v175, %v187
  %v196 = vmul.f32 %v192, %v192
  %v197 = vmul.f32 %v193, %v193
  %v198 = vmul.f32 %v194, %v194
  %v199 = vmul.f32 %v195, %v195
  %v200 = vmul.f32 %v196, 0.5
  %v201 = vmul.f32 %v197, 0.5
  %v202 = vmul.f32 %v198, 0.5
  %v203 = vmul.f32 %v199, 0.5
  %208 = vrot.lane.b32.xlu0 %v85, 92
  %v209 = vpop.permute.xlu0 %208
  %210 = vrot.lane.b32.xlu0 %v86, 92
  %v211 = vpop.permute.xlu0 %210
  %212 = vrot.lane.b32.xlu0 %v87, 92
  %v213 = vpop.permute.xlu0 %212
  %214 = vrot.lane.b32.xlu0 %v88, 92
  %v215 = vpop.permute.xlu0 %214
  %v220 = vsub.f32 %v200, %v209
  %v221 = vsub.f32 %v201, %v211
  %v222 = vsub.f32 %v202, %v213
  %v223 = vsub.f32 %v203, %v215
  %v224 = vld [vmem:[%s2] sm:$0xff]
  %vm225 = vcmask 261120
  %v226 = vsel %vm225, %v220, 0.0
  %v227 = vsel %vm225, %v221, 0.0
  %v228 = vadd.f32 %v226, %v227
  %v229 = vsel %vm225, %v222, 0.0
  %v230 = vadd.f32 %v228, %v229
  %v231 = vsel %vm225, %v223, 0.0
  %v232 = vadd.f32 %v230, %v231
  %v233 = vadd.f32 %v224, %v232
  %234 = vst.msk [vmem:[%s2] sm:$0xff] %vm225, %v233
  // Predicated region
  $region14: #{_lambda_.1} parent=0 // pred_check
    _
  $region15: #{_lambda_.1} parent=0 // pred_check_branch
    %236 = sbr.rel (0) target = $region17
  $region16: #{_lambda_.1} parent=0 // pred_region
    _
  $region17: #{_lambda_.1} parent=0 // pred_fallthru
    _
  // Predicated region
  $region18: #{_lambda_.1} parent=0 // pred_check
    _
  $region19: #{_lambda_.1} parent=0 // pred_check_branch
    %238 = sbr.rel (0) target = $region21
  $region20: #{_lambda_.1} parent=0 // pred_region
    _
  $region21: #{_lambda_.1} parent=0 // pred_fallthru
    _

</llo_original>
